<compile_context>
chip_gen: v5e
topology: v5e:2x2
jax: 0.10.0
libtpu: 0.0.40
codegen_flags: <defaults>
</compile_context>

<pallas_src>
import functools

import jax
import jax.numpy as jnp
from jax.experimental import pallas as pl
from jax.experimental.pallas import tpu as pltpu


def _round_up(x, m):
    return -(-x // m) * m


# ----------------------------------------------------------------------------
# Pallas kernel: gather/lerp (as matmul vs. pre-fused table) -> SiLU
#                -> Linear(512->512) -> SiLU, fully fused.
# ----------------------------------------------------------------------------
def diffusion_embedding_kernel(step_ref, embproj_ref, w2_ref, b2_ref, o_ref,
                               *, max_index):
    # step_ref   : (TB, 1)   int32 (lookup) or float32 (lerp) diffusion steps
    # embproj_ref: (Tp, 512) f32  pre-fused  emb_pad @ W1.T + b1
    # w2_ref     : (512, 512) bf16 projection2 weight, pre-transposed [in,out]
    # b2_ref     : (1, 512)   f32  projection2 bias
    # o_ref      : (TB, 512)
    steps = step_ref[...]                                     # (TB, 1)
    TB = steps.shape[0]
    Tp = embproj_ref.shape[0]
    pos = jax.lax.broadcasted_iota(jnp.int32, (TB, Tp), 1)    # (TB, Tp)

    if jnp.issubdtype(steps.dtype, jnp.integer):
        # exact table lookup as a one-hot selection (clamped to valid rows)
        idx = jnp.clip(steps, 0, max_index)
        coef = (pos == idx).astype(jnp.float32)
    else:
        # _lerp_embedding: (1-frac)*emb[floor(t)] + frac*emb[ceil(t)]
        t = jnp.clip(steps, 0.0, float(max_index))
        low = jnp.floor(t)
        frac = t - low
        low_i = low.astype(jnp.int32)
        high_i = jnp.ceil(t).astype(jnp.int32)
        coef = ((pos == low_i).astype(jnp.float32) * (1.0 - frac)
                + (pos == high_i).astype(jnp.float32) * frac)

    # Fused gather + Linear(128->512) + bias: (TB,Tp) @ (Tp,512), f32 MXU pass.
    h = jnp.dot(coef, embproj_ref[...], preferred_element_type=jnp.float32)
    h = h * jax.nn.sigmoid(h)                                 # SiLU (f32)

    # Linear(512 -> 512) + SiLU   (bf16 MXU operands, f32 accumulate)
    y = jnp.dot(h.astype(jnp.bfloat16), w2_ref[...],
                preferred_element_type=jnp.float32) + b2_ref[...]
    y = y * jax.nn.sigmoid(y)

    o_ref[...] = y.astype(o_ref.dtype)


def diffusion_embedding_pallas(diffusion_step, emb_proj, w2t, b2, max_index,
                               *, batch_tile=512, out_dtype=jnp.float32):
    """diffusion_step: (B,) int32 or float32.
    emb_proj: (Tp, 512) f32 pre-fused table.  w2t: (512, 512) bf16.
    b2: (1, 512) f32.  max_index: static Python int (= max_steps - 1)."""
    B = diffusion_step.shape[0]
    Tp = emb_proj.shape[0]

    # Single grid step for small B (amortize per-step overhead); for large B
    # use batch_tile (multiple of 128) so the "parallel" axis has >=2 steps
    # and both v7x TensorCores are used.
    if B <= batch_tile:
        TB = _round_up(max(B, 8), 8)
    else:
        TB = batch_tile
    Bp = _round_up(max(B, 8), TB)

    steps = diffusion_step.reshape(B, 1)
    if Bp != B:
        steps = jnp.concatenate(
            [steps, jnp.zeros((Bp - B, 1), dtype=steps.dtype)], axis=0)

    kernel = functools.partial(diffusion_embedding_kernel, max_index=max_index)
    resident = dict(pipeline_mode=pl.Buffered(1))   # grid-invariant operands

    out = pl.pallas_call(
        kernel,
        out_shape=jax.ShapeDtypeStruct((Bp, 512), out_dtype),
        grid_spec=pltpu.PrefetchScalarGridSpec(
            num_scalar_prefetch=0,
            grid=(Bp // TB,),
            in_specs=[
                pl.BlockSpec((TB, 1), lambda i: (i, 0)),               # steps
                pl.BlockSpec((Tp, 512), lambda i: (0, 0), **resident), # table@W1
                pl.BlockSpec((512, 512), lambda i: (0, 0), **resident),# W2
                pl.BlockSpec((1, 512), lambda i: (0, 0), **resident),  # b2
            ],
            out_specs=pl.BlockSpec((TB, 512), lambda i: (i, 0)),
        ),
        compiler_params=pltpu.CompilerParams(
            dimension_semantics=("parallel",)),
    )(steps, emb_proj, w2t, b2)

    if Bp != B:
        out = out[:B]
    return out


# ----------------------------------------------------------------------------
# Module setup (one-time, hoisted out of the forward path)
# ----------------------------------------------------------------------------
def build_embedding(max_steps):
    # table[t, d] = sin / cos ( t * 10^(d * 4/63) ), concat over the 64 dims
    steps = jnp.arange(max_steps, dtype=jnp.float32)[:, None]   # (T, 1)
    dims = jnp.arange(64, dtype=jnp.float32)[None, :]            # (1, 64)
    table = steps * 10.0 ** (dims * 4.0 / 63.0)                  # (T, 64)
    return jnp.concatenate([jnp.sin(table), jnp.cos(table)], axis=1)  # (T, 128)


def init_params(key):
    # nn.Linear default init: U(-1/sqrt(fan_in), 1/sqrt(fan_in)), PyTorch layout
    k1, k2, k3, k4 = jax.random.split(key, 4)
    bound1 = 1.0 / jnp.sqrt(128.0)
    bound2 = 1.0 / jnp.sqrt(512.0)
    w1 = jax.random.uniform(k1, (512, 128), jnp.float32, -bound1, bound1)
    b1 = jax.random.uniform(k2, (512,), jnp.float32, -bound1, bound1)
    w2 = jax.random.uniform(k3, (512, 512), jnp.float32, -bound2, bound2)
    b2 = jax.random.uniform(k4, (512,), jnp.float32, -bound2, bound2)
    return w1, b1, w2, b2


def prepare_device_params(embedding, params):
    """One-time hoist: pad the table's rows to a multiple of 128 (lane-dense
    coef / full-K MXU contraction), pre-fuse it with projection1
    (emb_proj = emb @ W1.T + b1, exact since coef rows sum to 1), and keep
    projection2 pre-transposed in bf16."""
    w1, b1, w2, b2 = params
    T, D = embedding.shape
    Tp = _round_up(T, 128)
    emb_pad = jnp.zeros((Tp, D), jnp.float32).at[:T].set(embedding)
    emb_proj = (emb_pad @ w1.T + b1[None, :]).astype(jnp.float32)  # (Tp, 512) f32
    dev_params = (emb_proj,
                  jnp.asarray(w2.T, dtype=jnp.bfloat16),           # (512, 512)
                  b2.reshape(1, -1).astype(jnp.float32))           # (1, 512)
    return dev_params, T - 1


def diffusion_embedding_forward(dev_params, diffusion_step, *, max_index):
    emb_proj, w2t, b2 = dev_params
    return diffusion_embedding_pallas(diffusion_step, emb_proj, w2t, b2,
                                      max_index)


# ----------------------------------------------------------------------------
# Pure-JAX f32 references (PyTorch semantics) for correctness checks
# ----------------------------------------------------------------------------
def diffusion_embedding_ref(embedding, params, diffusion_step):
    w1, b1, w2, b2 = params
    x = embedding[diffusion_step]
    h = x @ w1.T + b1
    h = h * jax.nn.sigmoid(h)
    y = h @ w2.T + b2
    return y * jax.nn.sigmoid(y)


def diffusion_embedding_lerp_ref(embedding, params, t):
    w1, b1, w2, b2 = params
    low_idx = jnp.floor(t).astype(jnp.int32)
    high_idx = jnp.ceil(t).astype(jnp.int32)
    low = embedding[low_idx]
    high = embedding[high_idx]
    x = low + (high - low) * (t - low_idx.astype(t.dtype))[:, None]
    h = x @ w1.T + b1
    h = h * jax.nn.sigmoid(h)
    y = h @ w2.T + b2
    return y * jax.nn.sigmoid(y)


if __name__ == "__main__":
    key = jax.random.PRNGKey(0)
    max_steps = 50
    batch = 8

    embedding = build_embedding(max_steps)                 # (50, 128) f32
    params_f32 = init_params(key)                          # PyTorch-layout f32
    dev_params, max_index = prepare_device_params(embedding, params_f32)

    fwd = jax.jit(functools.partial(diffusion_embedding_forward,
                                    max_index=max_index))

    # --- integer diffusion steps (embedding lookup path) ---
    diffusion_step = jax.random.randint(
        jax.random.PRNGKey(1), (batch,), 0, max_steps, dtype=jnp.int32)
    out = jax.block_until_ready(fwd(dev_params, diffusion_step))
    ref = diffusion_embedding_ref(embedding, params_f32, diffusion_step)
    assert out.shape == (batch, 512), out.shape
    # bf16 W2 in the kernel vs f32 reference -> loosened tolerance
    assert jnp.allclose(out, ref, atol=5e-2, rtol=5e-2), \
        float(jnp.max(jnp.abs(out - ref)))

    # --- float diffusion steps (lerp path) ---
    t_float = jax.random.uniform(
        jax.random.PRNGKey(2), (batch,), jnp.float32, 0.0, float(max_steps - 1))
    out_f = jax.block_until_ready(fwd(dev_params, t_float))
    ref_f = diffusion_embedding_lerp_ref(embedding, params_f32, t_float)
    assert out_f.shape == (batch, 512), out_f.shape
    assert jnp.allclose(out_f, ref_f, atol=5e-2, rtol=5e-2), \
        float(jnp.max(jnp.abs(out_f - ref_f)))

    print("KERNEL_OK")
</pallas_src>

<mosaic_0001>
module attributes {stable_mosaic.version = 11 : i64} {
  func.func @diffusion_embedding_kernel(%arg0: i32, %arg1: memref<8x1xi32, #tpu.memory_space<vmem>>, %arg2: memref<128x512xf32, #tpu.memory_space<vmem>>, %arg3: memref<512x512xbf16, #tpu.memory_space<vmem>>, %arg4: memref<1x512xf32, #tpu.memory_space<vmem>>, %arg5: memref<8x512xf32, #tpu.memory_space<vmem>>) attributes {dimension_semantics = [#tpu.dimension_semantics<parallel>], iteration_bounds = array<i64: 1>, scalar_prefetch = 0 : i64, scratch_operands = 0 : i64, tpu.core_type = #tpu.core_type<tc>, window_params = [{transform_indices = @transform_0, window_bounds = array<i64: 8, 1>}, {pipeline_mode = #tpu.pipeline_mode<synchronous>, transform_indices = @transform_1, window_bounds = array<i64: 128, 512>}, {pipeline_mode = #tpu.pipeline_mode<synchronous>, transform_indices = @transform_2, window_bounds = array<i64: 512, 512>}, {pipeline_mode = #tpu.pipeline_mode<synchronous>, transform_indices = @transform_3, window_bounds = array<i64: 1, 512>}, {transform_indices = @transform_4, window_bounds = array<i64: 8, 512>}]} {
    %c0 = arith.constant 0 : index
    %c0_0 = arith.constant 0 : index
    %0 = vector.load %arg1[%c0, %c0_0] : memref<8x1xi32, #tpu.memory_space<vmem>>, vector<8x1xi32>
    %1 = tpu.iota {dimensions = array<i32: 1>} : vector<8x128xi32>
    %c0_i32 = arith.constant 0 : i32
    %c49_i32 = arith.constant 49 : i32
    %2 = vector.broadcast %c0_i32 : i32 to vector<8x1xi32>
    %3 = arith.maxsi %2, %0 : vector<8x1xi32>
    %4 = vector.broadcast %c49_i32 : i32 to vector<8x1xi32>
    %5 = arith.minsi %4, %3 : vector<8x1xi32>
    %6 = vector.broadcast %5 : vector<8x1xi32> to vector<8x128xi32>
    %7 = arith.cmpi eq, %1, %6 : vector<8x128xi32>
    %8 = arith.extui %7 : vector<8x128xi1> to vector<8x128xi32>
    %9 = arith.sitofp %8 : vector<8x128xi32> to vector<8x128xf32>
    %c0_1 = arith.constant 0 : index
    %c0_2 = arith.constant 0 : index
    %10 = vector.load %arg2[%c0_1, %c0_2] : memref<128x512xf32, #tpu.memory_space<vmem>>, vector<128x512xf32>
    %cst = arith.constant dense<0.000000e+00> : vector<8x512xf32>
    %11 = tpu.matmul %9, %10, %cst {dimension_numbers = #tpu.dot_dimension_numbers<[1], [0], [0], [1], [0, 0, 1, 1], [], []>} : vector<8x128xf32>, vector<128x512xf32>, vector<8x512xf32> -> vector<8x512xf32>
    %12 = arith.negf %11 : vector<8x512xf32>
    %13 = math.exp %12 : vector<8x512xf32>
    %cst_3 = arith.constant 1.000000e+00 : f32
    %14 = vector.broadcast %cst_3 : f32 to vector<8x512xf32>
    %15 = arith.addf %14, %13 : vector<8x512xf32>
    %16 = arith.divf %14, %15 : vector<8x512xf32>
    %17 = arith.mulf %11, %16 : vector<8x512xf32>
    %18 = arith.truncf %17 : vector<8x512xf32> to vector<8x512xbf16>
    %c0_4 = arith.constant 0 : index
    %c0_5 = arith.constant 0 : index
    %19 = vector.load %arg3[%c0_4, %c0_5] : memref<512x512xbf16, #tpu.memory_space<vmem>>, vector<512x512xbf16>
    %cst_6 = arith.constant dense<0.000000e+00> : vector<8x512xf32>
    %20 = tpu.matmul %18, %19, %cst_6 {dimension_numbers = #tpu.dot_dimension_numbers<[1], [0], [0], [1], [0, 0, 1, 1], [], []>} : vector<8x512xbf16>, vector<512x512xbf16>, vector<8x512xf32> -> vector<8x512xf32>
    %c0_7 = arith.constant 0 : index
    %c0_8 = arith.constant 0 : index
    %21 = vector.load %arg4[%c0_7, %c0_8] : memref<1x512xf32, #tpu.memory_space<vmem>>, vector<1x512xf32>
    %22 = vector.broadcast %21 : vector<1x512xf32> to vector<8x512xf32>
    %23 = arith.addf %20, %22 : vector<8x512xf32>
    %24 = arith.negf %23 : vector<8x512xf32>
    %25 = math.exp %24 : vector<8x512xf32>
    %cst_9 = arith.constant 1.000000e+00 : f32
    %26 = vector.broadcast %cst_9 : f32 to vector<8x512xf32>
    %27 = arith.addf %26, %25 : vector<8x512xf32>
    %28 = arith.divf %26, %27 : vector<8x512xf32>
    %29 = arith.mulf %23, %28 : vector<8x512xf32>
    %c0_10 = arith.constant 0 : index
    %c0_11 = arith.constant 0 : index
    %30 = vector.load %arg5[%c0_10, %c0_11] : memref<8x512xf32, #tpu.memory_space<vmem>>, vector<8x512xf32>
    tpu.vector_store %arg5[%c0_10, %c0_11], %29 {strides = array<i32>} : memref<8x512xf32, #tpu.memory_space<vmem>>, vector<8x512xf32>,
    return
  }
  func.func @transform_0(%arg0: i32) -> (i32, i32) {
    %c0_i32 = arith.constant 0 : i32
    %c0_i32_0 = arith.constant 0 : i32
    return %arg0, %c0_i32 : i32, i32
  }
  func.func @transform_1(%arg0: i32) -> (i32, i32) {
    %c0_i32 = arith.constant 0 : i32
    %c0_i32_0 = arith.constant 0 : i32
    %c0_i32_1 = arith.constant 0 : i32
    return %c0_i32, %c0_i32_0 : i32, i32
  }
  func.func @transform_2(%arg0: i32) -> (i32, i32) {
    %c0_i32 = arith.constant 0 : i32
    %c0_i32_0 = arith.constant 0 : i32
    %c0_i32_1 = arith.constant 0 : i32
    return %c0_i32, %c0_i32_0 : i32, i32
  }
  func.func @transform_3(%arg0: i32) -> (i32, i32) {
    %c0_i32 = arith.constant 0 : i32
    %c0_i32_0 = arith.constant 0 : i32
    %c0_i32_1 = arith.constant 0 : i32
    return %c0_i32, %c0_i32_0 : i32, i32
  }
  func.func @transform_4(%arg0: i32) -> (i32, i32) {
    %c0_i32 = arith.constant 0 : i32
    %c0_i32_0 = arith.constant 0 : i32
    return %arg0, %c0_i32 : i32, i32
  }
}

</mosaic_0001>

<llo_original>
// kernel: diffusion_embedding_forward.1
$region0: #{diffusion_embedding_forward.1}
  #allocation0 [shape = 'u32[]', space=smem, size = 0x4, offset = 0x4, fixed_abs, tag = 'smem constant byte address 0x4 - core index']
  #allocation1 [shape = 'u32[72,128]{1,0:T(1,128)}', space=vmem, size = 0x9000, scoped, tag = 'internal scratch']
  %s0 = inlined_call_operand.vmem [shape: s32[8,1], index: 0, kind: input, shape index: {}]
  %s1 = inlined_call_operand.hbm [shape: f32[128,512], index: 1, kind: input, shape index: {}]
  %s2 = inlined_call_operand.hbm [shape: bf16[512,512], index: 2, kind: input, shape index: {}]
  %s3 = inlined_call_operand.vmem [shape: f32[1,512], index: 3, kind: input, shape index: {}]
  %s4 = inlined_call_operand.hbm [shape: f32[8,512], index: 4, kind: output, shape index: {}]
  %s5 = sld [smem:[#allocation0]]
  $region34: #{diffusion_embedding_forward.1} parent=0
    _
  %s7 = ssub.s32 1, %s5
  %s8 = scalar_select 0, %s7, %s5
  $region1: #{diffusion_embedding_forward.1} parent=0
    #allocation2 [shape = 'u8[262144]{0}', space=vmem, size = 0x40000, scoped, tag = 'input window, operand 1, single buffered']
    #allocation3 [shape = 's32[1]{0}', space=sflag, size = 0x4, scoped, tag = 'scoped memory for diffusion_embedding_forward.1']
    #allocation4 [shape = 's32[1]{0}', space=sflag, size = 0x4, scoped, tag = 'scoped memory for diffusion_embedding_forward.1']
    #allocation5 [shape = 'u8[524288]{0}', space=vmem, size = 0x80000, scoped, tag = 'input window, operand 2, single buffered']
    #allocation6 [shape = 's32[1]{0}', space=sflag, size = 0x4, scoped, tag = 'scoped memory for diffusion_embedding_forward.1']
    #allocation7 [shape = 'u8[16384]{0}', space=vmem, size = 0x4000, scoped, tag = 'output window, operand 0, single buffered']
    %9 = vsyncpa [#allocation3], 0
    %10 = vsyncpa [#allocation6], 0
    %11 = vsyncpa [#allocation4], 0
    // Predicated region
    $region2: #{diffusion_embedding_forward.1} parent=1 // pred_check
      _
    $region3: #{diffusion_embedding_forward.1} parent=1 // pred_check_branch
      %13 = sbr.rel (0) target = $region5
    $region4: #{diffusion_embedding_forward.1} parent=1 // pred_region
      _
    $region5: #{diffusion_embedding_forward.1} parent=1 // pred_fallthru
      _
    // Predicated region
    $region6: #{diffusion_embedding_forward.1} parent=1 // pred_check
      _
    $region7: #{diffusion_embedding_forward.1} parent=1 // pred_check_branch
      %15 = sbr.rel (0) target = $region9
    $region8: #{diffusion_embedding_forward.1} parent=1 // pred_region
      %17 = vsyncadd [#allocation3], 0
      %s18 = sshll.u32 %s1, 4
      %s19 = int_to_ptr.hbm [resolvable:$true] %s18
      %s20 = sshll.u32 [#allocation2], 4
      %s21 = int_to_ptr.vmem [resolvable:$true] %s20
      %26 = dma.hbm_to_vmem [thread:$0]  %s19, 8192, %s21, [#allocation3], 512, 512, 32
    $region9: #{diffusion_embedding_forward.1} parent=1 // pred_fallthru
      _
    // Predicated region
    $region10: #{diffusion_embedding_forward.1} parent=1 // pred_check
      _
    $region11: #{diffusion_embedding_forward.1} parent=1 // pred_check_branch
      %28 = sbr.rel (0) target = $region13
    $region12: #{diffusion_embedding_forward.1} parent=1 // pred_region
      %30 = vsyncadd [#allocation6], 0
      %s31 = sshll.u32 %s2, 4
      %s32 = int_to_ptr.hbm [resolvable:$true] %s31
      %s33 = sshll.u32 [#allocation5], 4
      %s34 = int_to_ptr.vmem [resolvable:$true] %s33
      %39 = dma.hbm_to_vmem [thread:$0]  %s32, 16384, %s34, [#allocation6], 256, 256, 16
    $region13: #{diffusion_embedding_forward.1} parent=1 // pred_fallthru
      _
    // Predicated region
    $region14: #{diffusion_embedding_forward.1} parent=1 // pred_check
      _
    $region15: #{diffusion_embedding_forward.1} parent=1 // pred_check_branch
      %41 = sbr.rel (0) target = $region17
    $region16: #{diffusion_embedding_forward.1} parent=1 // pred_region
      _
    $region17: #{diffusion_embedding_forward.1} parent=1 // pred_fallthru
      _
    // Predicated region
    $region18: #{diffusion_embedding_forward.1} parent=1 // pred_check
      _
    $region19: #{diffusion_embedding_forward.1} parent=1 // pred_check_branch
      %43 = sbr.rel (0) target = $region21
    $region20: #{diffusion_embedding_forward.1} parent=1 // pred_region
      %45 = dma.done [#allocation3], 8192
    $region21: #{diffusion_embedding_forward.1} parent=1 // pred_fallthru
      _
    // Predicated region
    $region22: #{diffusion_embedding_forward.1} parent=1 // pred_check
      _
    $region23: #{diffusion_embedding_forward.1} parent=1 // pred_check_branch
      %47 = sbr.rel (0) target = $region25
    $region24: #{diffusion_embedding_forward.1} parent=1 // pred_region
      %49 = dma.done [#allocation6], 16384
    $region25: #{diffusion_embedding_forward.1} parent=1 // pred_fallthru
      _
    %v50 = vld [vmem:[%s0] sm:$0xff]
    %v51 = vlaneseq
    %v52 = vand.u32 %v51, 127
    %vm53 = vcmp.gt.s32.totalorder %v50, 0
    %v54 = vsel %vm53, %v50, 0
    %vm55 = vcmp.lt.s32.totalorder %v54, 49
    %v56 = vsel %vm55, %v54, 49
    %57 = vset.pattern.permute.xlu0 0
    %58 = vperm.xlu0 %57, %v56
    %v59 = vpop.permute.xlu0 %58
    %vm60 = vcmp.eq.s32.totalorder %v52, %v59
    %v61 = vsel %vm60, 1, 0
    %v62 = vcvt.s32.f32 %v61
    %v63 = vld [vmem:[#allocation2] sm:$0xff]
    %v64 = vld [vmem:[#allocation2 + $0x8] sm:$0xff]
    %v65 = vld [vmem:[#allocation2 + $0x10] sm:$0xff]
    %v66 = vld [vmem:[#allocation2 + $0x18] sm:$0xff]
    %v67 = vld [vmem:[#allocation2 + $0x20] sm:$0xff]
    %v68 = vld [vmem:[#allocation2 + $0x28] sm:$0xff]
    %v69 = vld [vmem:[#allocation2 + $0x30] sm:$0xff]
    %v70 = vld [vmem:[#allocation2 + $0x38] sm:$0xff]
    %v71 = vld [vmem:[#allocation2 + $0x40] sm:$0xff]
    %v72 = vld [vmem:[#allocation2 + $0x48] sm:$0xff]
    %v73 = vld [vmem:[#allocation2 + $0x50] sm:$0xff]
    %v74 = vld [vmem:[#allocation2 + $0x58] sm:$0xff]
    %v75 = vld [vmem:[#allocation2 + $0x60] sm:$0xff]
    %v76 = vld [vmem:[#allocation2 + $0x68] sm:$0xff]
    %v77 = vld [vmem:[#allocation2 + $0x70] sm:$0xff]
    %v78 = vld [vmem:[#allocation2 + $0x78] sm:$0xff]
    %v79 = vld [vmem:[#allocation2 + $0x80] sm:$0xff]
    %v80 = vld [vmem:[#allocation2 + $0x88] sm:$0xff]
    %v81 = vld [vmem:[#allocation2 + $0x90] sm:$0xff]
    %v82 = vld [vmem:[#allocation2 + $0x98] sm:$0xff]
    %v83 = vld [vmem:[#allocation2 + $0xa0] sm:$0xff]
    %v84 = vld [vmem:[#allocation2 + $0xa8] sm:$0xff]
    %v85 = vld [vmem:[#allocation2 + $0xb0] sm:$0xff]
    %v86 = vld [vmem:[#allocation2 + $0xb8] sm:$0xff]
    %v87 = vld [vmem:[#allocation2 + $0xc0] sm:$0xff]
    %v88 = vld [vmem:[#allocation2 + $0xc8] sm:$0xff]
    %v89 = vld [vmem:[#allocation2 + $0xd0] sm:$0xff]
    %v90 = vld [vmem:[#allocation2 + $0xd8] sm:$0xff]
    %v91 = vld [vmem:[#allocation2 + $0xe0] sm:$0xff]
    %v92 = vld [vmem:[#allocation2 + $0xe8] sm:$0xff]
    %v93 = vld [vmem:[#allocation2 + $0xf0] sm:$0xff]
    %v94 = vld [vmem:[#allocation2 + $0xf8] sm:$0xff]
    %v95 = vld [vmem:[#allocation2 + $0x100] sm:$0xff]
    %v96 = vld [vmem:[#allocation2 + $0x108] sm:$0xff]
    %v97 = vld [vmem:[#allocation2 + $0x110] sm:$0xff]
    %v98 = vld [vmem:[#allocation2 + $0x118] sm:$0xff]
    %v99 = vld [vmem:[#allocation2 + $0x120] sm:$0xff]
    %v100 = vld [vmem:[#allocation2 + $0x128] sm:$0xff]
    %v101 = vld [vmem:[#allocation2 + $0x130] sm:$0xff]
    %v102 = vld [vmem:[#allocation2 + $0x138] sm:$0xff]
    %v103 = vld [vmem:[#allocation2 + $0x140] sm:$0xff]
    %v104 = vld [vmem:[#allocation2 + $0x148] sm:$0xff]
    %v105 = vld [vmem:[#allocation2 + $0x150] sm:$0xff]
    %v106 = vld [vmem:[#allocation2 + $0x158] sm:$0xff]
    %v107 = vld [vmem:[#allocation2 + $0x160] sm:$0xff]
    %v108 = vld [vmem:[#allocation2 + $0x168] sm:$0xff]
    %v109 = vld [vmem:[#allocation2 + $0x170] sm:$0xff]
    %v110 = vld [vmem:[#allocation2 + $0x178] sm:$0xff]
    %v111 = vld [vmem:[#allocation2 + $0x180] sm:$0xff]
    %v112 = vld [vmem:[#allocation2 + $0x188] sm:$0xff]
    %v113 = vld [vmem:[#allocation2 + $0x190] sm:$0xff]
    %v114 = vld [vmem:[#allocation2 + $0x198] sm:$0xff]
    %v115 = vld [vmem:[#allocation2 + $0x1a0] sm:$0xff]
    %v116 = vld [vmem:[#allocation2 + $0x1a8] sm:$0xff]
    %v117 = vld [vmem:[#allocation2 + $0x1b0] sm:$0xff]
    %v118 = vld [vmem:[#allocation2 + $0x1b8] sm:$0xff]
    %v119 = vld [vmem:[#allocation2 + $0x1c0] sm:$0xff]
    %v120 = vld [vmem:[#allocation2 + $0x1c8] sm:$0xff]
    %v121 = vld [vmem:[#allocation2 + $0x1d0] sm:$0xff]
    %v122 = vld [vmem:[#allocation2 + $0x1d8] sm:$0xff]
    %v123 = vld [vmem:[#allocation2 + $0x1e0] sm:$0xff]
    %v124 = vld [vmem:[#allocation2 + $0x1e8] sm:$0xff]
    %v125 = vld [vmem:[#allocation2 + $0x1f0] sm:$0xff]
    %v126 = vld [vmem:[#allocation2 + $0x1f8] sm:$0xff]
    %127 = vmatpush.msra.mxu0 %v123
    %128 = vmatpush.msra.mxu0 %v119
    %129 = vmatpush.msra.mxu0 %v115
    %130 = vmatpush.msra.mxu0 %v111
    %131 = vmatpush.msra.mxu0 %v107
    %132 = vmatpush.msra.mxu0 %v103
    %133 = vmatpush.msra.mxu0 %v99
    %134 = vmatpush.msra.mxu0 %v95
    %135 = vmatpush.msra.mxu0 %v91
    %136 = vmatpush.msra.mxu0 %v87
    %137 = vmatpush.msra.mxu0 %v83
    %138 = vmatpush.msra.mxu0 %v79
    %139 = vmatpush.msra.mxu0 %v75
    %140 = vmatpush.msra.mxu0 %v71
    %141 = vmatpush.msra.mxu0 %v67
    %142 = vmatpush.msra.mxu0 %v63
    %143 = vmatmul.f32.gmra.mxu0 %v62
    %v144 = vpop.f32.mrf.mxu0
    %v145 = vadd.f32 0.0, %v144
    %146 = vdwg.mxu0
    %147 = vmatpush.msra.mxu0 %v124
    %148 = vmatpush.msra.mxu0 %v120
    %149 = vmatpush.msra.mxu0 %v116
    %150 = vmatpush.msra.mxu0 %v112
    %151 = vmatpush.msra.mxu0 %v108
    %152 = vmatpush.msra.mxu0 %v104
    %153 = vmatpush.msra.mxu0 %v100
    %154 = vmatpush.msra.mxu0 %v96
    %155 = vmatpush.msra.mxu0 %v92
    %156 = vmatpush.msra.mxu0 %v88
    %157 = vmatpush.msra.mxu0 %v84
    %158 = vmatpush.msra.mxu0 %v80
    %159 = vmatpush.msra.mxu0 %v76
    %160 = vmatpush.msra.mxu0 %v72
    %161 = vmatpush.msra.mxu0 %v68
    %162 = vmatpush.msra.mxu0 %v64
    %163 = vmatmul.f32.gmra.mxu0 %v62
    %v164 = vpop.f32.mrf.mxu0
    %v165 = vadd.f32 0.0, %v164
    %166 = vdwg.mxu0
    %167 = vmatpush.msra.mxu0 %v125
    %168 = vmatpush.msra.mxu0 %v121
    %169 = vmatpush.msra.mxu0 %v117
    %170 = vmatpush.msra.mxu0 %v113
    %171 = vmatpush.msra.mxu0 %v109
    %172 = vmatpush.msra.mxu0 %v105
    %173 = vmatpush.msra.mxu0 %v101
    %174 = vmatpush.msra.mxu0 %v97
    %175 = vmatpush.msra.mxu0 %v93
    %176 = vmatpush.msra.mxu0 %v89
    %177 = vmatpush.msra.mxu0 %v85
    %178 = vmatpush.msra.mxu0 %v81
    %179 = vmatpush.msra.mxu0 %v77
    %180 = vmatpush.msra.mxu0 %v73
    %181 = vmatpush.msra.mxu0 %v69
    %182 = vmatpush.msra.mxu0 %v65
    %183 = vmatmul.f32.gmra.mxu0 %v62
    %v184 = vpop.f32.mrf.mxu0
    %v185 = vadd.f32 0.0, %v184
    %186 = vdwg.mxu0
    %187 = vmatpush.msra.mxu0 %v126
    %188 = vmatpush.msra.mxu0 %v122
    %189 = vmatpush.msra.mxu0 %v118
    %190 = vmatpush.msra.mxu0 %v114
    %191 = vmatpush.msra.mxu0 %v110
    %192 = vmatpush.msra.mxu0 %v106
    %193 = vmatpush.msra.mxu0 %v102
    %194 = vmatpush.msra.mxu0 %v98
    %195 = vmatpush.msra.mxu0 %v94
    %196 = vmatpush.msra.mxu0 %v90
    %197 = vmatpush.msra.mxu0 %v86
    %198 = vmatpush.msra.mxu0 %v82
    %199 = vmatpush.msra.mxu0 %v78
    %200 = vmatpush.msra.mxu0 %v74
    %201 = vmatpush.msra.mxu0 %v70
    %202 = vmatpush.msra.mxu0 %v66
    %203 = vmatmul.f32.gmra.mxu0 %v62
    %v204 = vpop.f32.mrf.mxu0
    %v205 = vadd.f32 0.0, %v204
    %206 = vdwg.mxu0
    %v207 = vxor.u32 %v145, 2147483648
    %v208 = vxor.u32 %v165, 2147483648
    %v209 = vxor.u32 %v185, 2147483648
    %v210 = vxor.u32 %v205, 2147483648
    %v211 = vmul.f32 %v207, 1.442695
    %v212 = vpow.pop %v211
    %v213 = vmul.f32 %v208, 1.442695
    %v214 = vpow.pop %v213
    %v215 = vmul.f32 %v209, 1.442695
    %v216 = vpow.pop %v215
    %v217 = vmul.f32 %v210, 1.442695
    %v218 = vpow.pop %v217
    %v219 = vadd.f32 %v212, 1.0
    %v220 = vadd.f32 %v214, 1.0
    %v221 = vadd.f32 %v216, 1.0
    %v222 = vadd.f32 %v218, 1.0
    %v223 = vrcp.pop %v219
    %v224 = vmul.f32 %v219, %v223
    %v225 = vsub.f32 1.0, %v224
    %v226 = vmul.f32 %v223, %v225
    %v227 = vadd.f32 %v223, %v226
    %vm228 = vweird.f32 %v219
    %vm229 = vweird.f32 %v223
    %vm230 = vmor %vm228, %vm229
    %v231 = vsel %vm230, %v223, %v227
    %v232 = vand.u32 2147483647, %v219
    %vm233 = vcmp.eq.f32.partialorder %v232, 8.507059e+37
    %v234 = vand.u32 %v219, 2147483648
    %v235 = vor.u32 1.1754944e-38, %v234
    %v236 = vsel %vm233, %v235, %v231
    %v237 = vmul.f32 1.0, %v236
    %v238 = vrcp.pop %v220
    %v239 = vmul.f32 %v220, %v238
    %v240 = vsub.f32 1.0, %v239
    %v241 = vmul.f32 %v238, %v240
    %v242 = vadd.f32 %v238, %v241
    %vm243 = vweird.f32 %v220
    %vm244 = vweird.f32 %v238
    %vm245 = vmor %vm243, %vm244
    %v246 = vsel %vm245, %v238, %v242
    %v247 = vand.u32 2147483647, %v220
    %vm248 = vcmp.eq.f32.partialorder %v247, 8.507059e+37
    %v249 = vand.u32 %v220, 2147483648
    %v250 = vor.u32 1.1754944e-38, %v249
    %v251 = vsel %vm248, %v250, %v246
    %v252 = vmul.f32 1.0, %v251
    %v253 = vrcp.pop %v221
    %v254 = vmul.f32 %v221, %v253
    %v255 = vsub.f32 1.0, %v254
    %v256 = vmul.f32 %v253, %v255
    %v257 = vadd.f32 %v253, %v256
    %vm258 = vweird.f32 %v221
    %vm259 = vweird.f32 %v253
    %vm260 = vmor %vm258, %vm259
    %v261 = vsel %vm260, %v253, %v257
    %v262 = vand.u32 2147483647, %v221
    %vm263 = vcmp.eq.f32.partialorder %v262, 8.507059e+37
    %v264 = vand.u32 %v221, 2147483648
    %v265 = vor.u32 1.1754944e-38, %v264
    %v266 = vsel %vm263, %v265, %v261
    %v267 = vmul.f32 1.0, %v266
    %v268 = vrcp.pop %v222
    %v269 = vmul.f32 %v222, %v268
    %v270 = vsub.f32 1.0, %v269
    %v271 = vmul.f32 %v268, %v270
    %v272 = vadd.f32 %v268, %v271
    %vm273 = vweird.f32 %v222
    %vm274 = vweird.f32 %v268
    %vm275 = vmor %vm273, %vm274
    %v276 = vsel %vm275, %v268, %v272
    %v277 = vand.u32 2147483647, %v222
    %vm278 = vcmp.eq.f32.partialorder %v277, 8.507059e+37
    %v279 = vand.u32 %v222, 2147483648
    %v280 = vor.u32 1.1754944e-38, %v279
    %v281 = vsel %vm278, %v280, %v276
    %v282 = vmul.f32 1.0, %v281
    %v283 = vmul.f32 %v145, %v237
    %v284 = vmul.f32 %v165, %v252
    %v285 = vmul.f32 %v185, %v267
    %v286 = vmul.f32 %v205, %v282
    %v287 = vpack.c.bf16 %v283, %v283
    %v288 = vpack.c.bf16 %v284, %v284
    %v289 = vpack.c.bf16 %v285, %v285
    %v290 = vpack.c.bf16 %v286, %v286
    %v291 = vld [vmem:[#allocation5] sm:$0xff]
    %v292 = vld [vmem:[#allocation5 + $0x8] sm:$0xff]
    %v293 = vld [vmem:[#allocation5 + $0x10] sm:$0xff]
    %v294 = vld [vmem:[#allocation5 + $0x18] sm:$0xff]
    %v295 = vld [vmem:[#allocation5 + $0x20] sm:$0xff]
    %v296 = vld [vmem:[#allocation5 + $0x28] sm:$0xff]
    %v297 = vld [vmem:[#allocation5 + $0x30] sm:$0xff]
    %v298 = vld [vmem:[#allocation5 + $0x38] sm:$0xff]
    %v299 = vld [vmem:[#allocation5 + $0x40] sm:$0xff]
    %v300 = vld [vmem:[#allocation5 + $0x48] sm:$0xff]
    %v301 = vld [vmem:[#allocation5 + $0x50] sm:$0xff]
    %v302 = vld [vmem:[#allocation5 + $0x58] sm:$0xff]
    %v303 = vld [vmem:[#allocation5 + $0x60] sm:$0xff]
    %v304 = vld [vmem:[#allocation5 + $0x68] sm:$0xff]
    %v305 = vld [vmem:[#allocation5 + $0x70] sm:$0xff]
    %v306 = vld [vmem:[#allocation5 + $0x78] sm:$0xff]
    %v307 = vld [vmem:[#allocation5 + $0x80] sm:$0xff]
    %v308 = vld [vmem:[#allocation5 + $0x88] sm:$0xff]
    %v309 = vld [vmem:[#allocation5 + $0x90] sm:$0xff]
    %v310 = vld [vmem:[#allocation5 + $0x98] sm:$0xff]
    %v311 = vld [vmem:[#allocation5 + $0xa0] sm:$0xff]
    %v312 = vld [vmem:[#allocation5 + $0xa8] sm:$0xff]
    %v313 = vld [vmem:[#allocation5 + $0xb0] sm:$0xff]
    %v314 = vld [vmem:[#allocation5 + $0xb8] sm:$0xff]
    %v315 = vld [vmem:[#allocation5 + $0xc0] sm:$0xff]
    %v316 = vld [vmem:[#allocation5 + $0xc8] sm:$0xff]
    %v317 = vld [vmem:[#allocation5 + $0xd0] sm:$0xff]
    %v318 = vld [vmem:[#allocation5 + $0xd8] sm:$0xff]
    %v319 = vld [vmem:[#allocation5 + $0xe0] sm:$0xff]
    %v320 = vld [vmem:[#allocation5 + $0xe8] sm:$0xff]
    %v321 = vld [vmem:[#allocation5 + $0xf0] sm:$0xff]
    %v322 = vld [vmem:[#allocation5 + $0xf8] sm:$0xff]
    %v323 = vld [vmem:[#allocation5 + $0x100] sm:$0xff]
    %v324 = vld [vmem:[#allocation5 + $0x108] sm:$0xff]
    %v325 = vld [vmem:[#allocation5 + $0x110] sm:$0xff]
    %v326 = vld [vmem:[#allocation5 + $0x118] sm:$0xff]
    %v327 = vld [vmem:[#allocation5 + $0x120] sm:$0xff]
    %v328 = vld [vmem:[#allocation5 + $0x128] sm:$0xff]
    %v329 = vld [vmem:[#allocation5 + $0x130] sm:$0xff]
    %v330 = vld [vmem:[#allocation5 + $0x138] sm:$0xff]
    %v331 = vld [vmem:[#allocation5 + $0x140] sm:$0xff]
    %v332 = vld [vmem:[#allocation5 + $0x148] sm:$0xff]
    %v333 = vld [vmem:[#allocation5 + $0x150] sm:$0xff]
    %v334 = vld [vmem:[#allocation5 + $0x158] sm:$0xff]
    %v335 = vld [vmem:[#allocation5 + $0x160] sm:$0xff]
    %v336 = vld [vmem:[#allocation5 + $0x168] sm:$0xff]
    %v337 = vld [vmem:[#allocation5 + $0x170] sm:$0xff]
    %v338 = vld [vmem:[#allocation5 + $0x178] sm:$0xff]
    %v339 = vld [vmem:[#allocation5 + $0x180] sm:$0xff]
    %v340 = vld [vmem:[#allocation5 + $0x188] sm:$0xff]
    %v341 = vld [vmem:[#allocation5 + $0x190] sm:$0xff]
    %v342 = vld [vmem:[#allocation5 + $0x198] sm:$0xff]
    %v343 = vld [vmem:[#allocation5 + $0x1a0] sm:$0xff]
    %v344 = vld [vmem:[#allocation5 + $0x1a8] sm:$0xff]
    %v345 = vld [vmem:[#allocation5 + $0x1b0] sm:$0xff]
    %v346 = vld [vmem:[#allocation5 + $0x1b8] sm:$0xff]
    %v347 = vld [vmem:[#allocation5 + $0x1c0] sm:$0xff]
    %v348 = vld [vmem:[#allocation5 + $0x1c8] sm:$0xff]
    %v349 = vld [vmem:[#allocation5 + $0x1d0] sm:$0xff]
    %v350 = vld [vmem:[#allocation5 + $0x1d8] sm:$0xff]
    %v351 = vld [vmem:[#allocation5 + $0x1e0] sm:$0xff]
    %v352 = vld [vmem:[#allocation5 + $0x1e8] sm:$0xff]
    %v353 = vld [vmem:[#allocation5 + $0x1f0] sm:$0xff]
    %v354 = vld [vmem:[#allocation5 + $0x1f8] sm:$0xff]
    %v355 = vld [vmem:[#allocation5 + $0x200] sm:$0xff]
    %v356 = vld [vmem:[#allocation5 + $0x208] sm:$0xff]
    %v357 = vld [vmem:[#allocation5 + $0x210] sm:$0xff]
    %v358 = vld [vmem:[#allocation5 + $0x218] sm:$0xff]
    %v359 = vld [vmem:[#allocation5 + $0x220] sm:$0xff]
    %v360 = vld [vmem:[#allocation5 + $0x228] sm:$0xff]
    %v361 = vld [vmem:[#allocation5 + $0x230] sm:$0xff]
    %v362 = vld [vmem:[#allocation5 + $0x238] sm:$0xff]
    %v363 = vld [vmem:[#allocation5 + $0x240] sm:$0xff]
    %v364 = vld [vmem:[#allocation5 + $0x248] sm:$0xff]
    %v365 = vld [vmem:[#allocation5 + $0x250] sm:$0xff]
    %v366 = vld [vmem:[#allocation5 + $0x258] sm:$0xff]
    %v367 = vld [vmem:[#allocation5 + $0x260] sm:$0xff]
    %v368 = vld [vmem:[#allocation5 + $0x268] sm:$0xff]
    %v369 = vld [vmem:[#allocation5 + $0x270] sm:$0xff]
    %v370 = vld [vmem:[#allocation5 + $0x278] sm:$0xff]
    %v371 = vld [vmem:[#allocation5 + $0x280] sm:$0xff]
    %v372 = vld [vmem:[#allocation5 + $0x288] sm:$0xff]
    %v373 = vld [vmem:[#allocation5 + $0x290] sm:$0xff]
    %v374 = vld [vmem:[#allocation5 + $0x298] sm:$0xff]
    %v375 = vld [vmem:[#allocation5 + $0x2a0] sm:$0xff]
    %v376 = vld [vmem:[#allocation5 + $0x2a8] sm:$0xff]
    %v377 = vld [vmem:[#allocation5 + $0x2b0] sm:$0xff]
    %v378 = vld [vmem:[#allocation5 + $0x2b8] sm:$0xff]
    %v379 = vld [vmem:[#allocation5 + $0x2c0] sm:$0xff]
    %v380 = vld [vmem:[#allocation5 + $0x2c8] sm:$0xff]
    %v381 = vld [vmem:[#allocation5 + $0x2d0] sm:$0xff]
    %v382 = vld [vmem:[#allocation5 + $0x2d8] sm:$0xff]
    %v383 = vld [vmem:[#allocation5 + $0x2e0] sm:$0xff]
    %v384 = vld [vmem:[#allocation5 + $0x2e8] sm:$0xff]
    %v385 = vld [vmem:[#allocation5 + $0x2f0] sm:$0xff]
    %v386 = vld [vmem:[#allocation5 + $0x2f8] sm:$0xff]
    %v387 = vld [vmem:[#allocation5 + $0x300] sm:$0xff]
    %v388 = vld [vmem:[#allocation5 + $0x308] sm:$0xff]
    %v389 = vld [vmem:[#allocation5 + $0x310] sm:$0xff]
    %v390 = vld [vmem:[#allocation5 + $0x318] sm:$0xff]
    %v391 = vld [vmem:[#allocation5 + $0x320] sm:$0xff]
    %v392 = vld [vmem:[#allocation5 + $0x328] sm:$0xff]
    %v393 = vld [vmem:[#allocation5 + $0x330] sm:$0xff]
    %v394 = vld [vmem:[#allocation5 + $0x338] sm:$0xff]
    %v395 = vld [vmem:[#allocation5 + $0x340] sm:$0xff]
    %v396 = vld [vmem:[#allocation5 + $0x348] sm:$0xff]
    %v397 = vld [vmem:[#allocation5 + $0x350] sm:$0xff]
    %v398 = vld [vmem:[#allocation5 + $0x358] sm:$0xff]
    %v399 = vld [vmem:[#allocation5 + $0x360] sm:$0xff]
    %v400 = vld [vmem:[#allocation5 + $0x368] sm:$0xff]
    %v401 = vld [vmem:[#allocation5 + $0x370] sm:$0xff]
    %v402 = vld [vmem:[#allocation5 + $0x378] sm:$0xff]
    %v403 = vld [vmem:[#allocation5 + $0x380] sm:$0xff]
    %v404 = vld [vmem:[#allocation5 + $0x388] sm:$0xff]
    %v405 = vld [vmem:[#allocation5 + $0x390] sm:$0xff]
    %v406 = vld [vmem:[#allocation5 + $0x398] sm:$0xff]
    %v407 = vld [vmem:[#allocation5 + $0x3a0] sm:$0xff]
    %v408 = vld [vmem:[#allocation5 + $0x3a8] sm:$0xff]
    %v409 = vld [vmem:[#allocation5 + $0x3b0] sm:$0xff]
    %v410 = vld [vmem:[#allocation5 + $0x3b8] sm:$0xff]
    %v411 = vld [vmem:[#allocation5 + $0x3c0] sm:$0xff]
    %v412 = vld [vmem:[#allocation5 + $0x3c8] sm:$0xff]
    %v413 = vld [vmem:[#allocation5 + $0x3d0] sm:$0xff]
    %v414 = vld [vmem:[#allocation5 + $0x3d8] sm:$0xff]
    %v415 = vld [vmem:[#allocation5 + $0x3e0] sm:$0xff]
    %v416 = vld [vmem:[#allocation5 + $0x3e8] sm:$0xff]
    %v417 = vld [vmem:[#allocation5 + $0x3f0] sm:$0xff]
    %v418 = vld [vmem:[#allocation5 + $0x3f8] sm:$0xff]
    %v419 = vld [vmem:[%s3] sm:$0xf]
    %v421 = vperm.slane %v419, 0
    %v422 = vperm.slane %v419, 1
    %v423 = vperm.slane %v419, 2
    %v424 = vperm.slane %v419, 3
    %v557 = vunpack.c.l.b16 %v291
    %v558 = vunpack.c.h.b16 %v291
    %v559 = vunpack.c.l.b16 %v292
    %v560 = vunpack.c.h.b16 %v292
    %v561 = vunpack.c.l.b16 %v293
    %v562 = vunpack.c.h.b16 %v293
    %v563 = vunpack.c.l.b16 %v294
    %v564 = vunpack.c.h.b16 %v294
    %v565 = vunpack.c.l.b16 %v295
    %v566 = vunpack.c.h.b16 %v295
    %v567 = vunpack.c.l.b16 %v296
    %v568 = vunpack.c.h.b16 %v296
    %v569 = vunpack.c.l.b16 %v297
    %v570 = vunpack.c.h.b16 %v297
    %v571 = vunpack.c.l.b16 %v298
    %v572 = vunpack.c.h.b16 %v298
    %v573 = vunpack.c.l.b16 %v299
    %v574 = vunpack.c.h.b16 %v299
    %v575 = vunpack.c.l.b16 %v300
    %v576 = vunpack.c.h.b16 %v300
    %v577 = vunpack.c.l.b16 %v301
    %v578 = vunpack.c.h.b16 %v301
    %v579 = vunpack.c.l.b16 %v302
    %v580 = vunpack.c.h.b16 %v302
    %v581 = vunpack.c.l.b16 %v303
    %v582 = vunpack.c.h.b16 %v303
    %v583 = vunpack.c.l.b16 %v304
    %v584 = vunpack.c.h.b16 %v304
    %v585 = vunpack.c.l.b16 %v305
    %v586 = vunpack.c.h.b16 %v305
    %v587 = vunpack.c.l.b16 %v306
    %v588 = vunpack.c.h.b16 %v306
    %v589 = vunpack.c.l.b16 %v307
    %v590 = vunpack.c.h.b16 %v307
    %v591 = vunpack.c.l.b16 %v308
    %v592 = vunpack.c.h.b16 %v308
    %v593 = vunpack.c.l.b16 %v309
    %v594 = vunpack.c.h.b16 %v309
    %v595 = vunpack.c.l.b16 %v310
    %v596 = vunpack.c.h.b16 %v310
    %v597 = vunpack.c.l.b16 %v311
    %v598 = vunpack.c.h.b16 %v311
    %v599 = vunpack.c.l.b16 %v312
    %v600 = vunpack.c.h.b16 %v312
    %v601 = vunpack.c.l.b16 %v313
    %v602 = vunpack.c.h.b16 %v313
    %v603 = vunpack.c.l.b16 %v314
    %v604 = vunpack.c.h.b16 %v314
    %v605 = vunpack.c.l.b16 %v315
    %v606 = vunpack.c.h.b16 %v315
    %v607 = vunpack.c.l.b16 %v316
    %v608 = vunpack.c.h.b16 %v316
    %v609 = vunpack.c.l.b16 %v317
    %v610 = vunpack.c.h.b16 %v317
    %v611 = vunpack.c.l.b16 %v318
    %v612 = vunpack.c.h.b16 %v318
    %v613 = vunpack.c.l.b16 %v319
    %v614 = vunpack.c.h.b16 %v319
    %v615 = vunpack.c.l.b16 %v320
    %v616 = vunpack.c.h.b16 %v320
    %v617 = vunpack.c.l.b16 %v321
    %v618 = vunpack.c.h.b16 %v321
    %v619 = vunpack.c.l.b16 %v322
    %v620 = vunpack.c.h.b16 %v322
    %v621 = vunpack.c.l.b16 %v323
    %v622 = vunpack.c.h.b16 %v323
    %v623 = vunpack.c.l.b16 %v324
    %v624 = vunpack.c.h.b16 %v324
    %v625 = vunpack.c.l.b16 %v325
    %v626 = vunpack.c.h.b16 %v325
    %v627 = vunpack.c.l.b16 %v326
    %v628 = vunpack.c.h.b16 %v326
    %v629 = vunpack.c.l.b16 %v327
    %v630 = vunpack.c.h.b16 %v327
    %v631 = vunpack.c.l.b16 %v328
    %v632 = vunpack.c.h.b16 %v328
    %v633 = vunpack.c.l.b16 %v329
    %v634 = vunpack.c.h.b16 %v329
    %v635 = vunpack.c.l.b16 %v330
    %v636 = vunpack.c.h.b16 %v330
    %v637 = vunpack.c.l.b16 %v331
    %v638 = vunpack.c.h.b16 %v331
    %v639 = vunpack.c.l.b16 %v332
    %v640 = vunpack.c.h.b16 %v332
    %v641 = vunpack.c.l.b16 %v333
    %v642 = vunpack.c.h.b16 %v333
    %v643 = vunpack.c.l.b16 %v334
    %v644 = vunpack.c.h.b16 %v334
    %v645 = vunpack.c.l.b16 %v335
    %v646 = vunpack.c.h.b16 %v335
    %v647 = vunpack.c.l.b16 %v336
    %v648 = vunpack.c.h.b16 %v336
    %v649 = vunpack.c.l.b16 %v337
    %v650 = vunpack.c.h.b16 %v337
    %v651 = vunpack.c.l.b16 %v338
    %v652 = vunpack.c.h.b16 %v338
    %v653 = vunpack.c.l.b16 %v339
    %v654 = vunpack.c.h.b16 %v339
    %v655 = vunpack.c.l.b16 %v340
    %v656 = vunpack.c.h.b16 %v340
    %v657 = vunpack.c.l.b16 %v341
    %v658 = vunpack.c.h.b16 %v341
    %v659 = vunpack.c.l.b16 %v342
    %v660 = vunpack.c.h.b16 %v342
    %v661 = vunpack.c.l.b16 %v343
    %v662 = vunpack.c.h.b16 %v343
    %v663 = vunpack.c.l.b16 %v344
    %v664 = vunpack.c.h.b16 %v344
    %v665 = vunpack.c.l.b16 %v345
    %v666 = vunpack.c.h.b16 %v345
    %v667 = vunpack.c.l.b16 %v346
    %v668 = vunpack.c.h.b16 %v346
    %v669 = vunpack.c.l.b16 %v347
    %v670 = vunpack.c.h.b16 %v347
    %v671 = vunpack.c.l.b16 %v348
    %v672 = vunpack.c.h.b16 %v348
    %v673 = vunpack.c.l.b16 %v349
    %v674 = vunpack.c.h.b16 %v349
    %v675 = vunpack.c.l.b16 %v350
    %v676 = vunpack.c.h.b16 %v350
    %v677 = vunpack.c.l.b16 %v351
    %v678 = vunpack.c.h.b16 %v351
    %v679 = vunpack.c.l.b16 %v352
    %v680 = vunpack.c.h.b16 %v352
    %v681 = vunpack.c.l.b16 %v353
    %v682 = vunpack.c.h.b16 %v353
    %v683 = vunpack.c.l.b16 %v354
    %v684 = vunpack.c.h.b16 %v354
    %v685 = vunpack.c.l.b16 %v355
    %v686 = vunpack.c.h.b16 %v355
    %v687 = vunpack.c.l.b16 %v356
    %v688 = vunpack.c.h.b16 %v356
    %v689 = vunpack.c.l.b16 %v357
    %v690 = vunpack.c.h.b16 %v357
    %v691 = vunpack.c.l.b16 %v358
    %v692 = vunpack.c.h.b16 %v358
    %v693 = vunpack.c.l.b16 %v359
    %v694 = vunpack.c.h.b16 %v359
    %v695 = vunpack.c.l.b16 %v360
    %v696 = vunpack.c.h.b16 %v360
    %v697 = vunpack.c.l.b16 %v361
    %v698 = vunpack.c.h.b16 %v361
    %v699 = vunpack.c.l.b16 %v362
    %v700 = vunpack.c.h.b16 %v362
    %v701 = vunpack.c.l.b16 %v363
    %v702 = vunpack.c.h.b16 %v363
    %v703 = vunpack.c.l.b16 %v364
    %v704 = vunpack.c.h.b16 %v364
    %v705 = vunpack.c.l.b16 %v365
    %v706 = vunpack.c.h.b16 %v365
    %v707 = vunpack.c.l.b16 %v366
    %v708 = vunpack.c.h.b16 %v366
    %v709 = vunpack.c.l.b16 %v367
    %v710 = vunpack.c.h.b16 %v367
    %v711 = vunpack.c.l.b16 %v368
    %v712 = vunpack.c.h.b16 %v368
    %v713 = vunpack.c.l.b16 %v369
    %v714 = vunpack.c.h.b16 %v369
    %v715 = vunpack.c.l.b16 %v370
    %v716 = vunpack.c.h.b16 %v370
    %v717 = vunpack.c.l.b16 %v371
    %v718 = vunpack.c.h.b16 %v371
    %v719 = vunpack.c.l.b16 %v372
    %v720 = vunpack.c.h.b16 %v372
    %v721 = vunpack.c.l.b16 %v373
    %v722 = vunpack.c.h.b16 %v373
    %v723 = vunpack.c.l.b16 %v374
    %v724 = vunpack.c.h.b16 %v374
    %v725 = vunpack.c.l.b16 %v375
    %v726 = vunpack.c.h.b16 %v375
    %v727 = vunpack.c.l.b16 %v376
    %v728 = vunpack.c.h.b16 %v376
    %v729 = vunpack.c.l.b16 %v377
    %v730 = vunpack.c.h.b16 %v377
    %v731 = vunpack.c.l.b16 %v378
    %v732 = vunpack.c.h.b16 %v378
    %v733 = vunpack.c.l.b16 %v379
    %v734 = vunpack.c.h.b16 %v379
    %v735 = vunpack.c.l.b16 %v380
    %v736 = vunpack.c.h.b16 %v380
    %v737 = vunpack.c.l.b16 %v381
    %v738 = vunpack.c.h.b16 %v381
    %v739 = vunpack.c.l.b16 %v382
    %v740 = vunpack.c.h.b16 %v382
    %v741 = vunpack.c.l.b16 %v383
    %v742 = vunpack.c.h.b16 %v383
    %v743 = vunpack.c.l.b16 %v384
    %v744 = vunpack.c.h.b16 %v384
    %v745 = vunpack.c.l.b16 %v385
    %v746 = vunpack.c.h.b16 %v385
    %v747 = vunpack.c.l.b16 %v386
    %v748 = vunpack.c.h.b16 %v386
    %v749 = vunpack.c.l.b16 %v387
    %v750 = vunpack.c.h.b16 %v387
    %v751 = vunpack.c.l.b16 %v388
    %v752 = vunpack.c.h.b16 %v388
    %v753 = vunpack.c.l.b16 %v389
    %v754 = vunpack.c.h.b16 %v389
    %v755 = vunpack.c.l.b16 %v390
    %v756 = vunpack.c.h.b16 %v390
    %v757 = vunpack.c.l.b16 %v391
    %v758 = vunpack.c.h.b16 %v391
    %v759 = vunpack.c.l.b16 %v392
    %v760 = vunpack.c.h.b16 %v392
    %v761 = vunpack.c.l.b16 %v393
    %v762 = vunpack.c.h.b16 %v393
    %v763 = vunpack.c.l.b16 %v394
    %v764 = vunpack.c.h.b16 %v394
    %v765 = vunpack.c.l.b16 %v395
    %v766 = vunpack.c.h.b16 %v395
    %v767 = vunpack.c.l.b16 %v396
    %v768 = vunpack.c.h.b16 %v396
    %v769 = vunpack.c.l.b16 %v397
    %v770 = vunpack.c.h.b16 %v397
    %v771 = vunpack.c.l.b16 %v398
    %v772 = vunpack.c.h.b16 %v398
    %v773 = vunpack.c.l.b16 %v399
    %v774 = vunpack.c.h.b16 %v399
    %v775 = vunpack.c.l.b16 %v400
    %v776 = vunpack.c.h.b16 %v400
    %v777 = vunpack.c.l.b16 %v401
    %v778 = vunpack.c.h.b16 %v401
    %v779 = vunpack.c.l.b16 %v402
    %v780 = vunpack.c.h.b16 %v402
    %v781 = vunpack.c.l.b16 %v403
    %v782 = vunpack.c.h.b16 %v403
    %v783 = vunpack.c.l.b16 %v404
    %v784 = vunpack.c.h.b16 %v404
    %v785 = vunpack.c.l.b16 %v405
    %v786 = vunpack.c.h.b16 %v405
    %v787 = vunpack.c.l.b16 %v406
    %v788 = vunpack.c.h.b16 %v406
    %v789 = vunpack.c.l.b16 %v407
    %v790 = vunpack.c.h.b16 %v407
    %v791 = vunpack.c.l.b16 %v408
    %v792 = vunpack.c.h.b16 %v408
    %v793 = vunpack.c.l.b16 %v409
    %v794 = vunpack.c.h.b16 %v409
    %v795 = vunpack.c.l.b16 %v410
    %v796 = vunpack.c.h.b16 %v410
    %v797 = vunpack.c.l.b16 %v411
    %v798 = vunpack.c.h.b16 %v411
    %v799 = vunpack.c.l.b16 %v412
    %v800 = vunpack.c.h.b16 %v412
    %v801 = vunpack.c.l.b16 %v413
    %v802 = vunpack.c.h.b16 %v413
    %v803 = vunpack.c.l.b16 %v414
    %v804 = vunpack.c.h.b16 %v414
    %v805 = vunpack.c.l.b16 %v415
    %v806 = vunpack.c.h.b16 %v415
    %v807 = vunpack.c.l.b16 %v416
    %v808 = vunpack.c.h.b16 %v416
    %v809 = vunpack.c.l.b16 %v417
    %v810 = vunpack.c.h.b16 %v417
    %v811 = vunpack.c.l.b16 %v418
    %v812 = vunpack.c.h.b16 %v418
    %v813 = vpack.c.b16 %v561, %v557
    %v814 = vpack.c.b16 %v562, %v558
    %v815 = vpack.c.b16 %v563, %v559
    %v816 = vpack.c.b16 %v564, %v560
    %v817 = vpack.c.b16 %v569, %v565
    %v818 = vpack.c.b16 %v570, %v566
    %v819 = vpack.c.b16 %v571, %v567
    %v820 = vpack.c.b16 %v572, %v568
    %v821 = vpack.c.b16 %v577, %v573
    %v822 = vpack.c.b16 %v578, %v574
    %v823 = vpack.c.b16 %v579, %v575
    %v824 = vpack.c.b16 %v580, %v576
    %v825 = vpack.c.b16 %v585, %v581
    %v826 = vpack.c.b16 %v586, %v582
    %v827 = vpack.c.b16 %v587, %v583
    %v828 = vpack.c.b16 %v588, %v584
    %v829 = vpack.c.b16 %v593, %v589
    %v830 = vpack.c.b16 %v594, %v590
    %v831 = vpack.c.b16 %v595, %v591
    %v832 = vpack.c.b16 %v596, %v592
    %v833 = vpack.c.b16 %v601, %v597
    %v834 = vpack.c.b16 %v602, %v598
    %v835 = vpack.c.b16 %v603, %v599
    %v836 = vpack.c.b16 %v604, %v600
    %v837 = vpack.c.b16 %v609, %v605
    %v838 = vpack.c.b16 %v610, %v606
    %v839 = vpack.c.b16 %v611, %v607
    %v840 = vpack.c.b16 %v612, %v608
    %v841 = vpack.c.b16 %v617, %v613
    %v842 = vpack.c.b16 %v618, %v614
    %v843 = vpack.c.b16 %v619, %v615
    %v844 = vpack.c.b16 %v620, %v616
    %v845 = vpack.c.b16 %v625, %v621
    %v846 = vpack.c.b16 %v626, %v622
    %v847 = vpack.c.b16 %v627, %v623
    %v848 = vpack.c.b16 %v628, %v624
    %v849 = vpack.c.b16 %v633, %v629
    %v850 = vpack.c.b16 %v634, %v630
    %v851 = vpack.c.b16 %v635, %v631
    %v852 = vpack.c.b16 %v636, %v632
    %v853 = vpack.c.b16 %v641, %v637
    %v854 = vpack.c.b16 %v642, %v638
    %v855 = vpack.c.b16 %v643, %v639
    %v856 = vpack.c.b16 %v644, %v640
    %v857 = vpack.c.b16 %v649, %v645
    %v858 = vpack.c.b16 %v650, %v646
    %v859 = vpack.c.b16 %v651, %v647
    %v860 = vpack.c.b16 %v652, %v648
    %v861 = vpack.c.b16 %v657, %v653
    %v862 = vpack.c.b16 %v658, %v654
    %v863 = vpack.c.b16 %v659, %v655
    %v864 = vpack.c.b16 %v660, %v656
    %v865 = vpack.c.b16 %v665, %v661
    %v866 = vpack.c.b16 %v666, %v662
    %v867 = vpack.c.b16 %v667, %v663
    %v868 = vpack.c.b16 %v668, %v664
    %v869 = vpack.c.b16 %v673, %v669
    %v870 = vpack.c.b16 %v674, %v670
    %v871 = vpack.c.b16 %v675, %v671
    %v872 = vpack.c.b16 %v676, %v672
    %v873 = vpack.c.b16 %v681, %v677
    %v874 = vpack.c.b16 %v682, %v678
    %v875 = vpack.c.b16 %v683, %v679
    %v876 = vpack.c.b16 %v684, %v680
    %v877 = vpack.c.b16 %v689, %v685
    %v878 = vpack.c.b16 %v690, %v686
    %v879 = vpack.c.b16 %v691, %v687
    %v880 = vpack.c.b16 %v692, %v688
    %v881 = vpack.c.b16 %v697, %v693
    %v882 = vpack.c.b16 %v698, %v694
    %v883 = vpack.c.b16 %v699, %v695
    %v884 = vpack.c.b16 %v700, %v696
    %v885 = vpack.c.b16 %v705, %v701
    %v886 = vpack.c.b16 %v706, %v702
    %v887 = vpack.c.b16 %v707, %v703
    %v888 = vpack.c.b16 %v708, %v704
    %v889 = vpack.c.b16 %v713, %v709
    %v890 = vpack.c.b16 %v714, %v710
    %v891 = vpack.c.b16 %v715, %v711
    %v892 = vpack.c.b16 %v716, %v712
    %v893 = vpack.c.b16 %v721, %v717
    %v894 = vpack.c.b16 %v722, %v718
    %v895 = vpack.c.b16 %v723, %v719
    %v896 = vpack.c.b16 %v724, %v720
    %v897 = vpack.c.b16 %v729, %v725
    %v898 = vpack.c.b16 %v730, %v726
    %v899 = vpack.c.b16 %v731, %v727
    %v900 = vpack.c.b16 %v732, %v728
    %v901 = vpack.c.b16 %v737, %v733
    %v902 = vpack.c.b16 %v738, %v734
    %v903 = vpack.c.b16 %v739, %v735
    %v904 = vpack.c.b16 %v740, %v736
    %v905 = vpack.c.b16 %v745, %v741
    %v906 = vpack.c.b16 %v746, %v742
    %v907 = vpack.c.b16 %v747, %v743
    %v908 = vpack.c.b16 %v748, %v744
    %v909 = vpack.c.b16 %v753, %v749
    %v910 = vpack.c.b16 %v754, %v750
    %v911 = vpack.c.b16 %v755, %v751
    %v912 = vpack.c.b16 %v756, %v752
    %v913 = vpack.c.b16 %v761, %v757
    %v914 = vpack.c.b16 %v762, %v758
    %v915 = vpack.c.b16 %v763, %v759
    %v916 = vpack.c.b16 %v764, %v760
    %v917 = vpack.c.b16 %v769, %v765
    %v918 = vpack.c.b16 %v770, %v766
    %v919 = vpack.c.b16 %v771, %v767
    %v920 = vpack.c.b16 %v772, %v768
    %v921 = vpack.c.b16 %v777, %v773
    %v922 = vpack.c.b16 %v778, %v774
    %v923 = vpack.c.b16 %v779, %v775
    %v924 = vpack.c.b16 %v780, %v776
    %v925 = vpack.c.b16 %v785, %v781
    %v926 = vpack.c.b16 %v786, %v782
    %v927 = vpack.c.b16 %v787, %v783
    %v928 = vpack.c.b16 %v788, %v784
    %v929 = vpack.c.b16 %v793, %v789
    %v930 = vpack.c.b16 %v794, %v790
    %v931 = vpack.c.b16 %v795, %v791
    %v932 = vpack.c.b16 %v796, %v792
    %v933 = vpack.c.b16 %v801, %v797
    %v934 = vpack.c.b16 %v802, %v798
    %v935 = vpack.c.b16 %v803, %v799
    %v936 = vpack.c.b16 %v804, %v800
    %v937 = vpack.c.b16 %v809, %v805
    %v938 = vpack.c.b16 %v810, %v806
    %v939 = vpack.c.b16 %v811, %v807
    %v940 = vpack.c.b16 %v812, %v808
    %1069 = vmatpush.bf16.msra.mxu0 %v841
    %1070 = vmatpush.bf16.msra.mxu0 %v837
    %1071 = vmatpush.bf16.msra.mxu0 %v833
    %1072 = vmatpush.bf16.msra.mxu0 %v829
    %1073 = vmatpush.bf16.msra.mxu0 %v825
    %1074 = vmatpush.bf16.msra.mxu0 %v821
    %1075 = vmatpush.bf16.msra.mxu0 %v817
    %1076 = vmatpush.bf16.msra.mxu0 %v813
    %1077 = vmatmul.bf16.gmra.mxu0 %v287
    %v1078 = vpop.f32.mrf.mxu0
    %v1079 = vadd.f32 %v421, %v1078
    %v1080 = vpop.f32.mrf.mxu0
    %1081 = vdwg.mxu0
    %1082 = vmatpush.bf16.msra.mxu0 %v873
    %1083 = vmatpush.bf16.msra.mxu0 %v869
    %1084 = vmatpush.bf16.msra.mxu0 %v865
    %1085 = vmatpush.bf16.msra.mxu0 %v861
    %1086 = vmatpush.bf16.msra.mxu0 %v857
    %1087 = vmatpush.bf16.msra.mxu0 %v853
    %1088 = vmatpush.bf16.msra.mxu0 %v849
    %1089 = vmatpush.bf16.msra.mxu0 %v845
    %1090 = vmatmul.bf16.gmra.mxu0 %v288
    %v1091 = vpop.f32.mrf.mxu0
    %v1092 = vadd.f32 %v1079, %v1091
    %v1093 = vpop.f32.mrf.mxu0
    %1094 = vdwg.mxu0
    %1095 = vmatpush.bf16.msra.mxu0 %v905
    %1096 = vmatpush.bf16.msra.mxu0 %v901
    %1097 = vmatpush.bf16.msra.mxu0 %v897
    %1098 = vmatpush.bf16.msra.mxu0 %v893
    %1099 = vmatpush.bf16.msra.mxu0 %v889
    %1100 = vmatpush.bf16.msra.mxu0 %v885
    %1101 = vmatpush.bf16.msra.mxu0 %v881
    %1102 = vmatpush.bf16.msra.mxu0 %v877
    %1103 = vmatmul.bf16.gmra.mxu0 %v289
    %v1104 = vpop.f32.mrf.mxu0
    %v1105 = vadd.f32 %v1092, %v1104
    %v1106 = vpop.f32.mrf.mxu0
    %1107 = vdwg.mxu0
    %1108 = vmatpush.bf16.msra.mxu0 %v937
    %1109 = vmatpush.bf16.msra.mxu0 %v933
    %1110 = vmatpush.bf16.msra.mxu0 %v929
    %1111 = vmatpush.bf16.msra.mxu0 %v925
    %1112 = vmatpush.bf16.msra.mxu0 %v921
    %1113 = vmatpush.bf16.msra.mxu0 %v917
    %1114 = vmatpush.bf16.msra.mxu0 %v913
    %1115 = vmatpush.bf16.msra.mxu0 %v909
    %1116 = vmatmul.bf16.gmra.mxu0 %v290
    %v1117 = vpop.f32.mrf.mxu0
    %v1118 = vadd.f32 %v1105, %v1117
    %v1119 = vpop.f32.mrf.mxu0
    %1120 = vdwg.mxu0
    %1121 = vmatpush.bf16.msra.mxu0 %v842
    %1122 = vmatpush.bf16.msra.mxu0 %v838
    %1123 = vmatpush.bf16.msra.mxu0 %v834
    %1124 = vmatpush.bf16.msra.mxu0 %v830
    %1125 = vmatpush.bf16.msra.mxu0 %v826
    %1126 = vmatpush.bf16.msra.mxu0 %v822
    %1127 = vmatpush.bf16.msra.mxu0 %v818
    %1128 = vmatpush.bf16.msra.mxu0 %v814
    %1129 = vmatmul.bf16.gmra.mxu0 %v287
    %v1130 = vpop.f32.mrf.mxu0
    %v1131 = vadd.f32 %v422, %v1130
    %v1132 = vpop.f32.mrf.mxu0
    %1133 = vdwg.mxu0
    %1134 = vmatpush.bf16.msra.mxu0 %v874
    %1135 = vmatpush.bf16.msra.mxu0 %v870
    %1136 = vmatpush.bf16.msra.mxu0 %v866
    %1137 = vmatpush.bf16.msra.mxu0 %v862
    %1138 = vmatpush.bf16.msra.mxu0 %v858
    %1139 = vmatpush.bf16.msra.mxu0 %v854
    %1140 = vmatpush.bf16.msra.mxu0 %v850
    %1141 = vmatpush.bf16.msra.mxu0 %v846
    %1142 = vmatmul.bf16.gmra.mxu0 %v288
    %v1143 = vpop.f32.mrf.mxu0
    %v1144 = vadd.f32 %v1131, %v1143
    %v1145 = vpop.f32.mrf.mxu0
    %1146 = vdwg.mxu0
    %1147 = vmatpush.bf16.msra.mxu0 %v906
    %1148 = vmatpush.bf16.msra.mxu0 %v902
    %1149 = vmatpush.bf16.msra.mxu0 %v898
    %1150 = vmatpush.bf16.msra.mxu0 %v894
    %1151 = vmatpush.bf16.msra.mxu0 %v890
    %1152 = vmatpush.bf16.msra.mxu0 %v886
    %1153 = vmatpush.bf16.msra.mxu0 %v882
    %1154 = vmatpush.bf16.msra.mxu0 %v878
    %1155 = vmatmul.bf16.gmra.mxu0 %v289
    %v1156 = vpop.f32.mrf.mxu0
    %v1157 = vadd.f32 %v1144, %v1156
    %v1158 = vpop.f32.mrf.mxu0
    %1159 = vdwg.mxu0
    %1160 = vmatpush.bf16.msra.mxu0 %v938
    %1161 = vmatpush.bf16.msra.mxu0 %v934
    %1162 = vmatpush.bf16.msra.mxu0 %v930
    %1163 = vmatpush.bf16.msra.mxu0 %v926
    %1164 = vmatpush.bf16.msra.mxu0 %v922
    %1165 = vmatpush.bf16.msra.mxu0 %v918
    %1166 = vmatpush.bf16.msra.mxu0 %v914
    %1167 = vmatpush.bf16.msra.mxu0 %v910
    %1168 = vmatmul.bf16.gmra.mxu0 %v290
    %v1169 = vpop.f32.mrf.mxu0
    %v1170 = vadd.f32 %v1157, %v1169
    %v1171 = vpop.f32.mrf.mxu0
    %1172 = vdwg.mxu0
    %1173 = vmatpush.bf16.msra.mxu0 %v843
    %1174 = vmatpush.bf16.msra.mxu0 %v839
    %1175 = vmatpush.bf16.msra.mxu0 %v835
    %1176 = vmatpush.bf16.msra.mxu0 %v831
    %1177 = vmatpush.bf16.msra.mxu0 %v827
    %1178 = vmatpush.bf16.msra.mxu0 %v823
    %1179 = vmatpush.bf16.msra.mxu0 %v819
    %1180 = vmatpush.bf16.msra.mxu0 %v815
    %1181 = vmatmul.bf16.gmra.mxu0 %v287
    %v1182 = vpop.f32.mrf.mxu0
    %v1183 = vadd.f32 %v423, %v1182
    %v1184 = vpop.f32.mrf.mxu0
    %1185 = vdwg.mxu0
    %1186 = vmatpush.bf16.msra.mxu0 %v875
    %1187 = vmatpush.bf16.msra.mxu0 %v871
    %1188 = vmatpush.bf16.msra.mxu0 %v867
    %1189 = vmatpush.bf16.msra.mxu0 %v863
    %1190 = vmatpush.bf16.msra.mxu0 %v859
    %1191 = vmatpush.bf16.msra.mxu0 %v855
    %1192 = vmatpush.bf16.msra.mxu0 %v851
    %1193 = vmatpush.bf16.msra.mxu0 %v847
    %1194 = vmatmul.bf16.gmra.mxu0 %v288
    %v1195 = vpop.f32.mrf.mxu0
    %v1196 = vadd.f32 %v1183, %v1195
    %v1197 = vpop.f32.mrf.mxu0
    %1198 = vdwg.mxu0
    %1199 = vmatpush.bf16.msra.mxu0 %v907
    %1200 = vmatpush.bf16.msra.mxu0 %v903
    %1201 = vmatpush.bf16.msra.mxu0 %v899
    %1202 = vmatpush.bf16.msra.mxu0 %v895
    %1203 = vmatpush.bf16.msra.mxu0 %v891
    %1204 = vmatpush.bf16.msra.mxu0 %v887
    %1205 = vmatpush.bf16.msra.mxu0 %v883
    %1206 = vmatpush.bf16.msra.mxu0 %v879
    %1207 = vmatmul.bf16.gmra.mxu0 %v289
    %v1208 = vpop.f32.mrf.mxu0
    %v1209 = vadd.f32 %v1196, %v1208
    %v1210 = vpop.f32.mrf.mxu0
    %1211 = vdwg.mxu0
    %1212 = vmatpush.bf16.msra.mxu0 %v939
    %1213 = vmatpush.bf16.msra.mxu0 %v935
    %1214 = vmatpush.bf16.msra.mxu0 %v931
    %1215 = vmatpush.bf16.msra.mxu0 %v927
    %1216 = vmatpush.bf16.msra.mxu0 %v923
    %1217 = vmatpush.bf16.msra.mxu0 %v919
    %1218 = vmatpush.bf16.msra.mxu0 %v915
    %1219 = vmatpush.bf16.msra.mxu0 %v911
    %1220 = vmatmul.bf16.gmra.mxu0 %v290
    %v1221 = vpop.f32.mrf.mxu0
    %v1222 = vadd.f32 %v1209, %v1221
    %v1223 = vpop.f32.mrf.mxu0
    %1224 = vdwg.mxu0
    %1225 = vmatpush.bf16.msra.mxu0 %v844
    %1226 = vmatpush.bf16.msra.mxu0 %v840
    %1227 = vmatpush.bf16.msra.mxu0 %v836
    %1228 = vmatpush.bf16.msra.mxu0 %v832
    %1229 = vmatpush.bf16.msra.mxu0 %v828
    %1230 = vmatpush.bf16.msra.mxu0 %v824
    %1231 = vmatpush.bf16.msra.mxu0 %v820
    %1232 = vmatpush.bf16.msra.mxu0 %v816
    %1233 = vmatmul.bf16.gmra.mxu0 %v287
    %v1234 = vpop.f32.mrf.mxu0
    %v1235 = vadd.f32 %v424, %v1234
    %v1236 = vpop.f32.mrf.mxu0
    %1237 = vdwg.mxu0
    %1238 = vmatpush.bf16.msra.mxu0 %v876
    %1239 = vmatpush.bf16.msra.mxu0 %v872
    %1240 = vmatpush.bf16.msra.mxu0 %v868
    %1241 = vmatpush.bf16.msra.mxu0 %v864
    %1242 = vmatpush.bf16.msra.mxu0 %v860
    %1243 = vmatpush.bf16.msra.mxu0 %v856
    %1244 = vmatpush.bf16.msra.mxu0 %v852
    %1245 = vmatpush.bf16.msra.mxu0 %v848
    %1246 = vmatmul.bf16.gmra.mxu0 %v288
    %v1247 = vpop.f32.mrf.mxu0
    %v1248 = vadd.f32 %v1235, %v1247
    %v1249 = vpop.f32.mrf.mxu0
    %1250 = vdwg.mxu0
    %1251 = vmatpush.bf16.msra.mxu0 %v908
    %1252 = vmatpush.bf16.msra.mxu0 %v904
    %1253 = vmatpush.bf16.msra.mxu0 %v900
    %1254 = vmatpush.bf16.msra.mxu0 %v896
    %1255 = vmatpush.bf16.msra.mxu0 %v892
    %1256 = vmatpush.bf16.msra.mxu0 %v888
    %1257 = vmatpush.bf16.msra.mxu0 %v884
    %1258 = vmatpush.bf16.msra.mxu0 %v880
    %1259 = vmatmul.bf16.gmra.mxu0 %v289
    %v1260 = vpop.f32.mrf.mxu0
    %v1261 = vadd.f32 %v1248, %v1260
    %v1262 = vpop.f32.mrf.mxu0
    %1263 = vdwg.mxu0
    %1264 = vmatpush.bf16.msra.mxu0 %v940
    %1265 = vmatpush.bf16.msra.mxu0 %v936
    %1266 = vmatpush.bf16.msra.mxu0 %v932
    %1267 = vmatpush.bf16.msra.mxu0 %v928
    %1268 = vmatpush.bf16.msra.mxu0 %v924
    %1269 = vmatpush.bf16.msra.mxu0 %v920
    %1270 = vmatpush.bf16.msra.mxu0 %v916
    %1271 = vmatpush.bf16.msra.mxu0 %v912
    %1272 = vmatmul.bf16.gmra.mxu0 %v290
    %v1273 = vpop.f32.mrf.mxu0
    %v1274 = vadd.f32 %v1261, %v1273
    %v1275 = vpop.f32.mrf.mxu0
    %1276 = vdwg.mxu0
    %v1277 = vxor.u32 %v1118, 2147483648
    %v1278 = vxor.u32 %v1170, 2147483648
    %v1279 = vxor.u32 %v1222, 2147483648
    %v1280 = vxor.u32 %v1274, 2147483648
    %v1281 = vmul.f32 %v1277, 1.442695
    %v1282 = vpow.pop %v1281
    %v1283 = vmul.f32 %v1278, 1.442695
    %v1284 = vpow.pop %v1283
    %v1285 = vmul.f32 %v1279, 1.442695
    %v1286 = vpow.pop %v1285
    %v1287 = vmul.f32 %v1280, 1.442695
    %v1288 = vpow.pop %v1287
    %v1289 = vadd.f32 %v1282, 1.0
    %v1290 = vadd.f32 %v1284, 1.0
    %v1291 = vadd.f32 %v1286, 1.0
    %v1292 = vadd.f32 %v1288, 1.0
    %v1293 = vrcp.pop %v1289
    %v1294 = vmul.f32 %v1289, %v1293
    %v1295 = vsub.f32 1.0, %v1294
    %v1296 = vmul.f32 %v1293, %v1295
    %v1297 = vadd.f32 %v1293, %v1296
    %vm1298 = vweird.f32 %v1289
    %vm1299 = vweird.f32 %v1293
    %vm1300 = vmor %vm1298, %vm1299
    %v1301 = vsel %vm1300, %v1293, %v1297
    %v1302 = vand.u32 2147483647, %v1289
    %vm1303 = vcmp.eq.f32.partialorder %v1302, 8.507059e+37
    %v1304 = vand.u32 %v1289, 2147483648
    %v1305 = vor.u32 1.1754944e-38, %v1304
    %v1306 = vsel %vm1303, %v1305, %v1301
    %v1307 = vmul.f32 1.0, %v1306
    %v1308 = vrcp.pop %v1290
    %v1309 = vmul.f32 %v1290, %v1308
    %v1310 = vsub.f32 1.0, %v1309
    %v1311 = vmul.f32 %v1308, %v1310
    %v1312 = vadd.f32 %v1308, %v1311
    %vm1313 = vweird.f32 %v1290
    %vm1314 = vweird.f32 %v1308
    %vm1315 = vmor %vm1313, %vm1314
    %v1316 = vsel %vm1315, %v1308, %v1312
    %v1317 = vand.u32 2147483647, %v1290
    %vm1318 = vcmp.eq.f32.partialorder %v1317, 8.507059e+37
    %v1319 = vand.u32 %v1290, 2147483648
    %v1320 = vor.u32 1.1754944e-38, %v1319
    %v1321 = vsel %vm1318, %v1320, %v1316
    %v1322 = vmul.f32 1.0, %v1321
    %v1323 = vrcp.pop %v1291
    %v1324 = vmul.f32 %v1291, %v1323
    %v1325 = vsub.f32 1.0, %v1324
    %v1326 = vmul.f32 %v1323, %v1325
    %v1327 = vadd.f32 %v1323, %v1326
    %vm1328 = vweird.f32 %v1291
    %vm1329 = vweird.f32 %v1323
    %vm1330 = vmor %vm1328, %vm1329
    %v1331 = vsel %vm1330, %v1323, %v1327
    %v1332 = vand.u32 2147483647, %v1291
    %vm1333 = vcmp.eq.f32.partialorder %v1332, 8.507059e+37
    %v1334 = vand.u32 %v1291, 2147483648
    %v1335 = vor.u32 1.1754944e-38, %v1334
    %v1336 = vsel %vm1333, %v1335, %v1331
    %v1337 = vmul.f32 1.0, %v1336
    %v1338 = vrcp.pop %v1292
    %v1339 = vmul.f32 %v1292, %v1338
    %v1340 = vsub.f32 1.0, %v1339
    %v1341 = vmul.f32 %v1338, %v1340
    %v1342 = vadd.f32 %v1338, %v1341
    %vm1343 = vweird.f32 %v1292
    %vm1344 = vweird.f32 %v1338
    %vm1345 = vmor %vm1343, %vm1344
    %v1346 = vsel %vm1345, %v1338, %v1342
    %v1347 = vand.u32 2147483647, %v1292
    %vm1348 = vcmp.eq.f32.partialorder %v1347, 8.507059e+37
    %v1349 = vand.u32 %v1292, 2147483648
    %v1350 = vor.u32 1.1754944e-38, %v1349
    %v1351 = vsel %vm1348, %v1350, %v1346
    %v1352 = vmul.f32 1.0, %v1351
    %v1353 = vmul.f32 %v1118, %v1307
    %v1354 = vmul.f32 %v1170, %v1322
    %v1355 = vmul.f32 %v1222, %v1337
    %v1356 = vmul.f32 %v1274, %v1352
    %1357 = vst [vmem:[#allocation7] sm:$0xff] %v1353
    %1358 = vst [vmem:[#allocation7 + $0x8] sm:$0xff] %v1354
    %1359 = vst [vmem:[#allocation7 + $0x10] sm:$0xff] %v1355
    %1360 = vst [vmem:[#allocation7 + $0x18] sm:$0xff] %v1356
    // Predicated region
    $region26: #{diffusion_embedding_forward.1} parent=1 // pred_check
      _
    $region27: #{diffusion_embedding_forward.1} parent=1 // pred_check_branch
      %1362 = sbr.rel (0) target = $region29
    $region28: #{diffusion_embedding_forward.1} parent=1 // pred_region
      %1364 = vsyncadd [#allocation4], 0
      %s1366 = sshll.u32 [#allocation7], 4
      %s1367 = int_to_ptr.vmem [resolvable:$true] %s1366
      %s1368 = sshll.u32 %s4, 4
      %s1369 = int_to_ptr.hbm [resolvable:$true] %s1368
      %1371 = dma.vmem_to_hbm [thread:$0]  %s1367, 512, %s1369, [#allocation4]
    $region29: #{diffusion_embedding_forward.1} parent=1 // pred_fallthru
      _
    // Predicated region
    $region30: #{diffusion_embedding_forward.1} parent=1 // pred_check
      _
    $region31: #{diffusion_embedding_forward.1} parent=1 // pred_check_branch
      %1373 = sbr.rel (0) target = $region33
    $region32: #{diffusion_embedding_forward.1} parent=1 // pred_region
      %1375 = dma.done [#allocation4], 512
    $region33: #{diffusion_embedding_forward.1} parent=1 // pred_fallthru
      _
    %1376 = vsyncpa [#allocation3], 1
    %1377 = vsyncpa [#allocation6], 1
    %1378 = vsyncpa [#allocation4], 1

</llo_original>
